<compile_context>
chip_gen: v6e
topology: v6e:2x2x1
jax: 0.10.0
libtpu: 0.0.40
codegen_flags: <defaults>
</compile_context>

<pallas_src>
import functools

import jax
import jax.numpy as jnp
from jax.experimental import pallas as pl
from jax.experimental.pallas import tpu as pltpu

_LANES = 128
_SUBLANES = 8
_MAX_BLOCK_ROWS = 2048                      # (2048, 128) f32 block = 1 MiB / input / buffer
_VMEM_LIMIT_BYTES = 32 * 1024 * 1024        # fits every generation's physical VMEM


def _dice_kernel(x_ref, t_ref, out_ref, *, block_rows):
    j = pl.program_id(1)                    # streaming block index ("arbitrary")

    @pl.when(j == 0)
    def _init():
        out_ref[...] = jnp.zeros_like(out_ref)

    x = x_ref[...].astype(jnp.float32)
    t = t_ref[...].astype(jnp.float32)
    # sigmoid(x) == 0.5 * tanh(0.5 * x) + 0.5  -> single EUP op per element.
    s = 0.5 * jnp.tanh(0.5 * x) + 0.5

    # Fold the block into the (8, 128) vector accumulators (pure VPU adds);
    # the cross-lane reduction is deferred to the JAX wrapper.
    folds = block_rows // _SUBLANES
    out_ref[0, 0] += jnp.sum((s * t).reshape(folds, _SUBLANES, _LANES), axis=0)
    out_ref[0, 1] += jnp.sum((s + t).reshape(folds, _SUBLANES, _LANES), axis=0)


def _num_tensorcores():
    # Best-effort: 2 TensorCores per chip only on megacore-style parts (v7x).
    try:
        return max(1, int(getattr(jax.devices()[0], "num_cores", 1)))
    except Exception:
        return 1


def dice_loss(inputs, targets, smooth=1.0):
    """Pallas implementation of DiceLoss.forward (returns a scalar float32)."""
    x = inputs.reshape(-1)
    t = targets.reshape(-1)
    n = x.shape[0]

    # Rows of 128 lanes that form complete (8, 128) tiles -> multiple of 8.
    rows_avail = (n // (_SUBLANES * _LANES)) * _SUBLANES

    inter = jnp.float32(0.0)
    denom = jnp.float32(0.0)
    n_kernel = 0

    if rows_avail > 0:
        block_rows = min(_MAX_BLOCK_ROWS, rows_avail)       # multiple of 8
        blocks_total = rows_avail // block_rows
        num_splits = 2 if (_num_tensorcores() >= 2 and blocks_total >= 2) else 1
        blocks_per_split = blocks_total // num_splits
        rows_kernel = num_splits * blocks_per_split * block_rows
        n_kernel = rows_kernel * _LANES

        # Lane-dense 2-D views of the exactly-covered prefix (no pad, no copy
        # of the whole inputs; dtypes are passed through and upcast in-kernel).
        x2 = x[:n_kernel].reshape(rows_kernel, _LANES)
        t2 = t[:n_kernel].reshape(rows_kernel, _LANES)

        def in_map(c, j):
            return (c * blocks_per_split + j, 0)

        kernel = functools.partial(_dice_kernel, block_rows=block_rows)

        out_bytes = num_splits * 2 * _SUBLANES * _LANES * 4
        cost = pl.CostEstimate(
            flops=6 * n_kernel,
            transcendentals=n_kernel,
            bytes_accessed=n_kernel * (x2.dtype.itemsize + t2.dtype.itemsize)
            + out_bytes,
        )

        partials = pl.pallas_call(
            kernel,
            out_shape=jax.ShapeDtypeStruct(
                (num_splits, 2, _SUBLANES, _LANES), jnp.float32),
            grid_spec=pltpu.PrefetchScalarGridSpec(
                num_scalar_prefetch=0,
                grid=(num_splits, blocks_per_split),
                in_specs=[
                    pl.BlockSpec((block_rows, _LANES), in_map),
                    pl.BlockSpec((block_rows, _LANES), in_map),
                ],
                out_specs=pl.BlockSpec((1, 2, _SUBLANES, _LANES),
                                       lambda c, j: (c, 0, 0, 0)),
            ),
            compiler_params=pltpu.CompilerParams(
                dimension_semantics=("parallel", "arbitrary"),
                vmem_limit_bytes=_VMEM_LIMIT_BYTES,
            ),
            cost_estimate=cost,
        )(x2, t2)

        sums = jnp.sum(partials, axis=(0, 2, 3))   # [sum(s*t), sum(s)+sum(t)]
        inter = sums[0]
        denom = sums[1]

    # Ragged tail (< one block; often < 1024 elements): tiny plain-JAX reduce.
    if n_kernel < n:
        xt = x[n_kernel:].astype(jnp.float32)
        tt = t[n_kernel:].astype(jnp.float32)
        st = jax.nn.sigmoid(xt)
        inter = inter + jnp.sum(st * tt)
        denom = denom + jnp.sum(st) + jnp.sum(tt)

    dice = (2.0 * inter + smooth) / (denom + smooth)
    return 1.0 - dice


def _dice_loss_ref(inputs, targets, smooth=1.0):
    s = jax.nn.sigmoid(inputs.reshape(-1).astype(jnp.float32))
    t = targets.reshape(-1).astype(jnp.float32)
    inter = jnp.sum(s * t)
    dice = (2.0 * inter + smooth) / (jnp.sum(s) + jnp.sum(t) + smooth)
    return 1.0 - dice


if __name__ == "__main__":
    key = jax.random.PRNGKey(0)
    k_x, k_t = jax.random.split(key)

    # Primary small test: segmentation-head-like [B, C, H, W].
    B, C, H, W = 2, 4, 16, 16
    inputs = jax.random.normal(k_x, (B, C, H, W), dtype=jnp.float32)             # logits
    targets = (jax.random.uniform(k_t, (B, C, H, W)) > 0.5).astype(jnp.float32)  # binary mask

    out = dice_loss(inputs, targets, smooth=1.0)
    out = jax.block_until_ready(out)
    ref = _dice_loss_ref(inputs, targets, smooth=1.0)
    assert jnp.allclose(out, ref, rtol=1e-5, atol=1e-5), (out, ref)

    # Secondary checks: ragged tail (plain-JAX fold) and multi-block coverage.
    for shape in [(3, 5, 33, 47), (5, 8, 128, 103)]:
        k_a, k_b, key = jax.random.split(key, 3)
        xi = jax.random.normal(k_a, shape, dtype=jnp.float32)
        ti = (jax.random.uniform(k_b, shape) > 0.5).astype(jnp.float32)
        o = jax.block_until_ready(dice_loss(xi, ti, smooth=1.0))
        r = _dice_loss_ref(xi, ti, smooth=1.0)
        assert jnp.allclose(o, r, rtol=1e-4, atol=1e-5), (shape, o, r)

    print("KERNEL_OK")
</pallas_src>

<mosaic_0001>
module attributes {stable_mosaic.version = 11 : i64} {
  func.func @_dice_kernel(%arg0: i32, %arg1: i32, %arg2: memref<16x128xf32, #tpu.memory_space<vmem>>, %arg3: memref<16x128xf32, #tpu.memory_space<vmem>>, %arg4: memref<1x2x8x128xf32, #tpu.memory_space<vmem>>) attributes {dimension_semantics = [#tpu.dimension_semantics<parallel>, #tpu.dimension_semantics<arbitrary>], iteration_bounds = array<i64: 1, 1>, scalar_prefetch = 0 : i64, scratch_operands = 0 : i64, tpu.core_type = #tpu.core_type<tc>, window_params = [{transform_indices = @transform_0, window_bounds = array<i64: 16, 128>}, {transform_indices = @transform_1, window_bounds = array<i64: 16, 128>}, {transform_indices = @transform_2, window_bounds = array<i64: 1, 2, 8, 128>}]} {
    %c0_i32 = arith.constant 0 : i32
    %0 = arith.cmpi eq, %arg1, %c0_i32 : i32
    %1 = arith.extui %0 : i1 to i32
    %c0_i32_0 = arith.constant 0 : i32
    %2 = arith.cmpi ne, %1, %c0_i32_0 : i32
    scf.if %2 {
      %cst_23 = arith.constant 0.000000e+00 : f32
      %30 = vector.broadcast %cst_23 : f32 to vector<1x2x8x128xf32>
      %c0_24 = arith.constant 0 : index
      %c0_25 = arith.constant 0 : index
      %c0_26 = arith.constant 0 : index
      %c0_27 = arith.constant 0 : index
      %31 = vector.load %arg4[%c0_24, %c0_25, %c0_26, %c0_27] : memref<1x2x8x128xf32, #tpu.memory_space<vmem>>, vector<1x2x8x128xf32>
      tpu.vector_store %arg4[%c0_24, %c0_25, %c0_26, %c0_27], %30 {strides = array<i32>} : memref<1x2x8x128xf32, #tpu.memory_space<vmem>>, vector<1x2x8x128xf32>,
    } else {
    }
    %c0 = arith.constant 0 : index
    %c0_1 = arith.constant 0 : index
    %3 = vector.load %arg2[%c0, %c0_1] : memref<16x128xf32, #tpu.memory_space<vmem>>, vector<16x128xf32>
    %c0_2 = arith.constant 0 : index
    %c0_3 = arith.constant 0 : index
    %4 = vector.load %arg3[%c0_2, %c0_3] : memref<16x128xf32, #tpu.memory_space<vmem>>, vector<16x128xf32>
    %cst = arith.constant 5.000000e-01 : f32
    %5 = vector.broadcast %cst : f32 to vector<16x128xf32>
    %6 = arith.mulf %5, %3 : vector<16x128xf32>
    %7 = math.tanh %6 : vector<16x128xf32>
    %cst_4 = arith.constant 5.000000e-01 : f32
    %8 = vector.broadcast %cst_4 : f32 to vector<16x128xf32>
    %9 = arith.mulf %8, %7 : vector<16x128xf32>
    %cst_5 = arith.constant 5.000000e-01 : f32
    %10 = vector.broadcast %cst_5 : f32 to vector<16x128xf32>
    %11 = arith.addf %9, %10 : vector<16x128xf32>
    %c0_6 = arith.constant 0 : index
    %c0_7 = arith.constant 0 : index
    %c0_8 = arith.constant 0 : index
    %c0_9 = arith.constant 0 : index
    %12 = vector.load %arg4[%c0_6, %c0_7, %c0_8, %c0_9] : memref<1x2x8x128xf32, #tpu.memory_space<vmem>>, vector<1x1x8x128xf32>
    %13 = vector.shape_cast %12 : vector<1x1x8x128xf32> to vector<8x128xf32>
    %14 = arith.mulf %11, %4 : vector<16x128xf32>
    %15 = vector.shape_cast %14 : vector<16x128xf32> to vector<2x8x128xf32>
    %cst_10 = arith.constant dense<0.000000e+00> : vector<8x128xf32>
    %16 = vector.multi_reduction <add>, %15, %cst_10 [0] : vector<2x8x128xf32> to vector<8x128xf32>
    %17 = arith.addf %13, %16 : vector<8x128xf32>
    %c0_11 = arith.constant 0 : index
    %c0_12 = arith.constant 0 : index
    %c0_13 = arith.constant 0 : index
    %c0_14 = arith.constant 0 : index
    %18 = vector.load %arg4[%c0_11, %c0_12, %c0_13, %c0_14] : memref<1x2x8x128xf32, #tpu.memory_space<vmem>>, vector<1x1x8x128xf32>
    %19 = vector.shape_cast %18 : vector<1x1x8x128xf32> to vector<8x128xf32>
    %20 = vector.shape_cast %17 : vector<8x128xf32> to vector<1x1x8x128xf32>
    tpu.vector_store %arg4[%c0_11, %c0_12, %c0_13, %c0_14], %20 {strides = array<i32>} : memref<1x2x8x128xf32, #tpu.memory_space<vmem>>, vector<1x1x8x128xf32>,
    %c0_15 = arith.constant 0 : index
    %c1 = arith.constant 1 : index
    %c0_16 = arith.constant 0 : index
    %c0_17 = arith.constant 0 : index
    %21 = vector.load %arg4[%c0_15, %c1, %c0_16, %c0_17] : memref<1x2x8x128xf32, #tpu.memory_space<vmem>>, vector<1x1x8x128xf32>
    %22 = vector.shape_cast %21 : vector<1x1x8x128xf32> to vector<8x128xf32>
    %23 = arith.addf %11, %4 : vector<16x128xf32>
    %24 = vector.shape_cast %23 : vector<16x128xf32> to vector<2x8x128xf32>
    %cst_18 = arith.constant dense<0.000000e+00> : vector<8x128xf32>
    %25 = vector.multi_reduction <add>, %24, %cst_18 [0] : vector<2x8x128xf32> to vector<8x128xf32>
    %26 = arith.addf %22, %25 : vector<8x128xf32>
    %c0_19 = arith.constant 0 : index
    %c1_20 = arith.constant 1 : index
    %c0_21 = arith.constant 0 : index
    %c0_22 = arith.constant 0 : index
    %27 = vector.load %arg4[%c0_19, %c1_20, %c0_21, %c0_22] : memref<1x2x8x128xf32, #tpu.memory_space<vmem>>, vector<1x1x8x128xf32>
    %28 = vector.shape_cast %27 : vector<1x1x8x128xf32> to vector<8x128xf32>
    %29 = vector.shape_cast %26 : vector<8x128xf32> to vector<1x1x8x128xf32>
    tpu.vector_store %arg4[%c0_19, %c1_20, %c0_21, %c0_22], %29 {strides = array<i32>} : memref<1x2x8x128xf32, #tpu.memory_space<vmem>>, vector<1x1x8x128xf32>,
    return
  }
  func.func @transform_0(%arg0: i32, %arg1: i32) -> (i32, i32) {
    %c1_i32 = arith.constant 1 : i32
    %0 = arith.muli %arg0, %c1_i32 : i32
    %1 = arith.addi %0, %arg1 : i32
    %c0_i32 = arith.constant 0 : i32
    %c0_i32_0 = arith.constant 0 : i32
    return %1, %c0_i32 : i32, i32
  }
  func.func @transform_1(%arg0: i32, %arg1: i32) -> (i32, i32) {
    %c1_i32 = arith.constant 1 : i32
    %0 = arith.muli %arg0, %c1_i32 : i32
    %1 = arith.addi %0, %arg1 : i32
    %c0_i32 = arith.constant 0 : i32
    %c0_i32_0 = arith.constant 0 : i32
    return %1, %c0_i32 : i32, i32
  }
  func.func @transform_2(%arg0: i32, %arg1: i32) -> (i32, i32, i32, i32) {
    %c0_i32 = arith.constant 0 : i32
    %c0_i32_0 = arith.constant 0 : i32
    %c0_i32_1 = arith.constant 0 : i32
    %c0_i32_2 = arith.constant 0 : i32
    return %arg0, %c0_i32, %c0_i32_0, %c0_i32_1 : i32, i32, i32, i32
  }
}

</mosaic_0001>

<llo_original>
// kernel: tpu_custom_call.1
$region0: #{tpu_custom_call.1}
  #allocation0 [shape = 'u32[]', space=smem, size = 0x4, offset = 0x4, fixed_abs, tag = 'smem constant byte address 0x4 - core index']
  #allocation1 [shape = 'u32[144,128]{1,0:T(1,128)}', space=vmem, size = 0x12000, scoped, tag = 'internal scratch']
  %s0 = inlined_call_operand.hbm [shape: f32[16,128], index: 0, kind: input, shape index: {}]
  %s1 = inlined_call_operand.hbm [shape: f32[16,128], index: 1, kind: input, shape index: {}]
  %s2 = inlined_call_operand.hbm [shape: f32[1,2,8,128], index: 2, kind: output, shape index: {}]
  %s3 = sld [smem:[#allocation0]]
  $region30: #{tpu_custom_call.1} parent=0
    _
  %s5 = ssub.s32 1, %s3
  %s6 = scalar_select 0, %s5, %s3
  $region1: #{tpu_custom_call.1} parent=0
    #allocation2 [shape = 'u8[8192]{0}', space=vmem, size = 0x2000, scoped, tag = 'input window, operand 0, single buffered']
    #allocation3 [shape = 's32[1]{0}', space=sflag, size = 0x4, scoped, tag = 'scoped memory for tpu_custom_call.1']
    #allocation4 [shape = 's32[1]{0}', space=sflag, size = 0x4, scoped, tag = 'scoped memory for tpu_custom_call.1']
    #allocation5 [shape = 'u8[8192]{0}', space=vmem, size = 0x2000, scoped, tag = 'input window, operand 1, single buffered']
    #allocation6 [shape = 's32[1]{0}', space=sflag, size = 0x4, scoped, tag = 'scoped memory for tpu_custom_call.1']
    #allocation7 [shape = 'u8[8192]{0}', space=vmem, size = 0x2000, scoped, tag = 'output window, operand 0, single buffered']
    %7 = vsyncpa [#allocation3], 0
    %8 = vsyncpa [#allocation6], 0
    %9 = vsyncpa [#allocation4], 0
    // Predicated region
    $region2: #{tpu_custom_call.1} parent=1 // pred_check
      _
    $region3: #{tpu_custom_call.1} parent=1 // pred_check_branch
      %11 = sbr.rel (0) target = $region5
    $region4: #{tpu_custom_call.1} parent=1 // pred_region
      %s12 = sadd.s32 0, 0
      %s13 = smul.u32 2, %s12
      %s15 = ssub.s32 256, 256
      %16 = vsyncadd [#allocation3], %s15
      %s17 = smul.addr %s13, 128
      %s18 = scalar_lea.hbm %s0, %s17
      %s19 = sshll.u32 [#allocation2], 4
      %s20 = int_to_ptr.vmem [resolvable:$true] %s19
      %25 = dma.hbm_to_vmem [thread:$0]  %s18, 256, %s20, [#allocation3], 128, 128, 8
    $region5: #{tpu_custom_call.1} parent=1 // pred_fallthru
      _
    // Predicated region
    $region6: #{tpu_custom_call.1} parent=1 // pred_check
      _
    $region7: #{tpu_custom_call.1} parent=1 // pred_check_branch
      %27 = sbr.rel (0) target = $region9
    $region8: #{tpu_custom_call.1} parent=1 // pred_region
      %s28 = sadd.s32 0, 0
      %s29 = smul.u32 2, %s28
      %s31 = ssub.s32 256, 256
      %32 = vsyncadd [#allocation6], %s31
      %s33 = smul.addr %s29, 128
      %s34 = scalar_lea.hbm %s1, %s33
      %s35 = sshll.u32 [#allocation5], 4
      %s36 = int_to_ptr.vmem [resolvable:$true] %s35
      %41 = dma.hbm_to_vmem [thread:$0]  %s34, 256, %s36, [#allocation6], 128, 128, 8
    $region9: #{tpu_custom_call.1} parent=1 // pred_fallthru
      _
    // Predicated region
    $region10: #{tpu_custom_call.1} parent=1 // pred_check
      _
    $region11: #{tpu_custom_call.1} parent=1 // pred_check_branch
      %43 = sbr.rel (0) target = $region13
    $region12: #{tpu_custom_call.1} parent=1 // pred_region
      %44 = dma.done [#allocation3], 256
    $region13: #{tpu_custom_call.1} parent=1 // pred_fallthru
      _
    // Predicated region
    $region14: #{tpu_custom_call.1} parent=1 // pred_check
      _
    $region15: #{tpu_custom_call.1} parent=1 // pred_check_branch
      %46 = sbr.rel (0) target = $region17
    $region16: #{tpu_custom_call.1} parent=1 // pred_region
      %47 = dma.done [#allocation6], 256
    $region17: #{tpu_custom_call.1} parent=1 // pred_fallthru
      _
    %s48 = sadd.s32 0, 0
    %s49 = smul.u32 2, %s48
    %s50 = sadd.s32 0, 0
    %s51 = smul.u32 2, %s50
    %p52 = scmp.eq.s32.totalorder 0, 0
    // Predicated region
    $region18: #{tpu_custom_call.1} parent=1 // pred_check
      %p53 = pneg %p52
    $region19: #{tpu_custom_call.1} parent=1 // pred_check_branch
      %55 = sbr.rel (%p53) target = $region21
    $region20: #{tpu_custom_call.1} parent=1 // pred_region
      %56 = vst [vmem:[#allocation7] sm:$0xff] 0.0
      %57 = vst [vmem:[#allocation7 + $0x8] sm:$0xff] 0.0
    $region21: #{tpu_custom_call.1} parent=1 // pred_fallthru
      _
    %v58 = vld [vmem:[#allocation2] sm:$0xff]
    %v59 = vld [vmem:[#allocation2 + $0x8] sm:$0xff]
    %v60 = vld [vmem:[#allocation5] sm:$0xff]
    %v61 = vld [vmem:[#allocation5 + $0x8] sm:$0xff]
    %v62 = vmul.f32 %v58, 0.5
    %v63 = vmul.f32 %v59, 0.5
    %v64 = vtanh.pop %v62
    %v65 = vtanh.pop %v63
    %v66 = vmul.f32 %v64, 0.5
    %v67 = vmul.f32 %v65, 0.5
    %v68 = vadd.f32 %v66, 0.5
    %v69 = vadd.f32 %v67, 0.5
    %v70 = vld [vmem:[#allocation7] sm:$0xff]
    %v71 = vmul.f32 %v68, %v60
    %v72 = vmul.f32 %v69, %v61
    %v73 = vadd.f32 %v71, %v72
    %v74 = vadd.f32 %v70, %v73
    %75 = vst [vmem:[#allocation7] sm:$0xff] %v74
    %s76 = scalar_lea.vmem [#allocation7], 8
    %v77 = vld [vmem:[%s76] sm:$0xff]
    %v78 = vadd.f32 %v68, %v60
    %v79 = vadd.f32 %v69, %v61
    %v80 = vadd.f32 %v78, %v79
    %v81 = vadd.f32 %v77, %v80
    %82 = vst [vmem:[%s76] sm:$0xff] %v81
    // Predicated region
    $region22: #{tpu_custom_call.1} parent=1 // pred_check
      _
    $region23: #{tpu_custom_call.1} parent=1 // pred_check_branch
      %84 = sbr.rel (0) target = $region25
    $region24: #{tpu_custom_call.1} parent=1 // pred_region
      %s86 = ssub.s32 256, 256
      %87 = vsyncadd [#allocation4], %s86
      %s88 = sshll.u32 [#allocation7], 4
      %s89 = int_to_ptr.vmem [resolvable:$true] %s88
      %94 = dma.vmem_to_hbm [thread:$0]  %s89, 256, %s2, [#allocation4], 128, 128, 8
    $region25: #{tpu_custom_call.1} parent=1 // pred_fallthru
      _
    // Predicated region
    $region26: #{tpu_custom_call.1} parent=1 // pred_check
      _
    $region27: #{tpu_custom_call.1} parent=1 // pred_check_branch
      %96 = sbr.rel (0) target = $region29
    $region28: #{tpu_custom_call.1} parent=1 // pred_region
      %97 = dma.done [#allocation4], 256
    $region29: #{tpu_custom_call.1} parent=1 // pred_fallthru
      _
    %98 = vsyncpa [#allocation3], 1
    %99 = vsyncpa [#allocation6], 1
    %100 = vsyncpa [#allocation4], 1

</llo_original>
